<compile_context>
chip_gen: v6e
topology: v6e:2x2x1
jax: 0.10.0
libtpu: 0.0.40
codegen_flags: <defaults>
</compile_context>

<pallas_src>
import functools
import math

import jax
import jax.numpy as jnp
import numpy as np
from jax import lax
from jax.experimental import pallas as pl
from jax.experimental.pallas import tpu as pltpu


# ----------------------------------------------------------------------------
# Parameter setup (mirrors PositionalEncoding.__init__)
# ----------------------------------------------------------------------------
def make_pe_table(max_len: int, d_model: int) -> jnp.ndarray:
    """Builds the (max_len, 1, d_model) sinusoidal PE buffer."""
    position = np.arange(max_len, dtype=np.float32)[:, None]               # (L, 1)
    div_term = np.exp(
        np.arange(0, d_model, 2, dtype=np.float32) * (-math.log(10000.0) / d_model)
    )                                                                       # (D/2,)
    pe = np.zeros((max_len, d_model), dtype=np.float32)
    pe[:, 0::2] = np.sin(position * div_term)
    pe[:, 1::2] = np.cos(position * div_term)
    return jnp.asarray(pe[:, None, :])                                      # (L, 1, D)


# ----------------------------------------------------------------------------
# Pallas kernel: out = dropout(x + pe), on a lane-dense 2-D slab (rows, cols)
# ----------------------------------------------------------------------------
def _pe_dropout_kernel(seed_ref, x_ref, pe_ref, o_ref, *, p, training,
                       tile_r, tile_c, padded_cols):
    y = x_ref[...] + pe_ref[...]

    if training and p > 0.0:
        # Counter-based hash of the global element index -> 32 random bits.
        row0 = pl.program_id(0) * tile_r
        col0 = pl.program_id(1) * tile_c
        rows = lax.broadcasted_iota(jnp.int32, y.shape, 0) + row0
        cols = lax.broadcasted_iota(jnp.int32, y.shape, 1) + col0
        idx = (rows * padded_cols + cols).astype(jnp.uint32)

        seed = seed_ref[0].astype(jnp.uint32)
        h = idx ^ (seed * jnp.uint32(0x9E3779B1))
        h = (h ^ (h >> 16)) * jnp.uint32(0x85EBCA6B)
        h = (h ^ (h >> 13)) * jnp.uint32(0xC2B2AE35)
        h = h ^ (h >> 16)

        # Integer-threshold compare: keep with prob (1 - p), scale by 1/(1-p).
        bits31 = (h >> 1).astype(jnp.int32)                      # in [0, 2^31)
        thr = jnp.int32(min(int(round(p * float(1 << 31))), (1 << 31) - 1))
        keep = bits31 >= thr
        scale = jnp.asarray(1.0 / (1.0 - p), dtype=y.dtype)
        y = jnp.where(keep, y * scale, jnp.zeros_like(y))

    o_ref[...] = y.astype(o_ref.dtype)


# ----------------------------------------------------------------------------
# Wrapper: flatten to (S, B*D) slab, grid + blocked BlockSpecs, reshape back
# ----------------------------------------------------------------------------
def positional_encoding(x, pe_table, seed, *, p: float = 0.1, training: bool = True):
    """x: (seq_len, batch, d_model); pe_table: (max_len, 1, d_model)."""
    S, B, D = x.shape
    C = B * D

    # Lane-dense 2-D slab: flatten (B, D) -> columns; tile the PE row across
    # batch on the host (tiny table) and cast once to x.dtype.
    x2 = x.reshape(S, C)
    pe2 = jnp.tile(pe_table[:S, 0, :].astype(x.dtype), (1, B))             # (S, C)
    seed_arr = jnp.asarray([seed], dtype=jnp.int32)

    # Tile sizing: ~2 MiB per block (x, pe, out each double-buffered -> ~12 MiB
    # VMEM, safe on v5e/v6e/v7x); columns a multiple of 128 (or the full C).
    itemsize = np.dtype(x.dtype).itemsize
    tile_c = C if C <= 4096 else 4096
    tile_r = (2 * 1024 * 1024) // (tile_c * itemsize)
    tile_r = max(8, (tile_r // 8) * 8)
    if tile_r >= S:
        tile_r = S
    grid = (pl.cdiv(S, tile_r), pl.cdiv(C, tile_c))
    padded_cols = pl.cdiv(C, tile_c) * tile_c

    kernel = functools.partial(
        _pe_dropout_kernel, p=float(p), training=bool(training),
        tile_r=int(tile_r), tile_c=int(tile_c), padded_cols=int(padded_cols))

    out2 = pl.pallas_call(
        kernel,
        out_shape=jax.ShapeDtypeStruct((S, C), x.dtype),
        grid=grid,
        in_specs=[
            pl.BlockSpec(memory_space=pltpu.MemorySpace.SMEM),        # seed scalar
            pl.BlockSpec((tile_r, tile_c), lambda i, j: (i, j)),      # x slab
            pl.BlockSpec((tile_r, tile_c), lambda i, j: (i, j)),      # pe slab
        ],
        out_specs=pl.BlockSpec((tile_r, tile_c), lambda i, j: (i, j)),
        compiler_params=pltpu.CompilerParams(
            dimension_semantics=("parallel", "parallel"),
            vmem_limit_bytes=64 << 20),
    )(seed_arr, x2, pe2)

    return out2.reshape(S, B, D)


# ----------------------------------------------------------------------------
# Demo / self-check
# ----------------------------------------------------------------------------
if __name__ == "__main__":
    d_model = 32
    max_len = 64
    seq_len = 8
    batch = 2
    p = 0.1

    key = jax.random.PRNGKey(0)
    x = jax.random.normal(key, (seq_len, batch, d_model), dtype=jnp.float32)
    pe_table = make_pe_table(max_len, d_model)

    ref = x + pe_table[:seq_len]                                           # (S, B, D)

    # Eval mode: dropout is identity -> exact match against plain JAX reference.
    out_eval = positional_encoding(x, pe_table, seed=0, p=p, training=False)
    out_eval = jax.block_until_ready(out_eval)
    np.testing.assert_allclose(np.asarray(out_eval), np.asarray(ref),
                               rtol=1e-6, atol=1e-6)

    # Training mode: stochastic inverted dropout, deterministic given the seed.
    out_train = positional_encoding(x, pe_table, seed=1234, p=p, training=True)
    out_train = jax.block_until_ready(out_train)
    out_np = np.asarray(out_train)
    ref_np = np.asarray(ref)

    kept = out_np != 0.0
    assert kept.any(), "dropout zeroed everything -- RNG path broken"
    assert (~kept).any(), "dropout dropped nothing -- RNG path broken"
    expected_kept = ref_np * np.float32(1.0 / (1.0 - p))
    np.testing.assert_allclose(out_np[kept], expected_kept[kept],
                               rtol=1e-5, atol=1e-5)

    print("KERNEL_OK")
</pallas_src>

<mosaic_0001>
module attributes {stable_mosaic.version = 11 : i64} {
  func.func @_pe_dropout_kernel(%arg0: i32, %arg1: i32, %arg2: memref<1xi32, #tpu.memory_space<smem>>, %arg3: memref<8x64xf32, #tpu.memory_space<vmem>>, %arg4: memref<8x64xf32, #tpu.memory_space<vmem>>, %arg5: memref<8x64xf32, #tpu.memory_space<vmem>>) attributes {dimension_semantics = [#tpu.dimension_semantics<parallel>, #tpu.dimension_semantics<parallel>], iteration_bounds = array<i64: 1, 1>, scalar_prefetch = 0 : i64, scratch_operands = 0 : i64, tpu.core_type = #tpu.core_type<tc>, window_params = [{transform_indices = @transform_0, window_bounds = array<i64: 1>}, {transform_indices = @transform_1, window_bounds = array<i64: 8, 64>}, {transform_indices = @transform_2, window_bounds = array<i64: 8, 64>}, {transform_indices = @transform_3, window_bounds = array<i64: 8, 64>}]} {
    %c0 = arith.constant 0 : index
    %c0_0 = arith.constant 0 : index
    %0 = vector.load %arg3[%c0, %c0_0] : memref<8x64xf32, #tpu.memory_space<vmem>>, vector<8x64xf32>
    %c0_1 = arith.constant 0 : index
    %c0_2 = arith.constant 0 : index
    %1 = vector.load %arg4[%c0_1, %c0_2] : memref<8x64xf32, #tpu.memory_space<vmem>>, vector<8x64xf32>
    %2 = arith.addf %0, %1 : vector<8x64xf32>
    %c0_3 = arith.constant 0 : index
    %c0_4 = arith.constant 0 : index
    %3 = vector.load %arg5[%c0_3, %c0_4] : memref<8x64xf32, #tpu.memory_space<vmem>>, vector<8x64xf32>
    tpu.vector_store %arg5[%c0_3, %c0_4], %2 {strides = array<i32>} : memref<8x64xf32, #tpu.memory_space<vmem>>, vector<8x64xf32>,
    return
  }
  func.func @transform_0(%arg0: i32, %arg1: i32) -> i32 {
    %c0_i32 = arith.constant 0 : i32
    %c0_i32_0 = arith.constant 0 : i32
    return %c0_i32 : i32
  }
  func.func @transform_1(%arg0: i32, %arg1: i32) -> (i32, i32) {
    %c0_i32 = arith.constant 0 : i32
    return %arg0, %arg1 : i32, i32
  }
  func.func @transform_2(%arg0: i32, %arg1: i32) -> (i32, i32) {
    %c0_i32 = arith.constant 0 : i32
    return %arg0, %arg1 : i32, i32
  }
  func.func @transform_3(%arg0: i32, %arg1: i32) -> (i32, i32) {
    %c0_i32 = arith.constant 0 : i32
    return %arg0, %arg1 : i32, i32
  }
}

</mosaic_0001>

<llo_original>
// kernel: tpu_custom_call.1
$region0: #{tpu_custom_call.1}
  #allocation0 [shape = 'u32[]', space=smem, size = 0x4, offset = 0x4, fixed_abs, tag = 'smem constant byte address 0x4 - core index']
  #allocation1 [shape = 'u32[144,128]{1,0:T(1,128)}', space=vmem, size = 0x12000, scoped, tag = 'internal scratch']
  #allocation2 [shape = 's32[1]{0:T(128)S(6)}', space=smem, size = 0x200, scoped, tag = 'scoped memory for tpu_custom_call.1']
  %s0 = inlined_call_operand.<no memory space> [shape: s32[1], index: 0, kind: input, shape index: {}]
  %s1 = inlined_call_operand.hbm [shape: f32[8,64], index: 1, kind: input, shape index: {}]
  %s2 = inlined_call_operand.hbm [shape: f32[8,64], index: 2, kind: input, shape index: {}]
  %s3 = inlined_call_operand.hbm [shape: f32[8,64], index: 3, kind: output, shape index: {}]
  %s4 = sld [smem:[#allocation0]]
  $region30: #{tpu_custom_call.1} parent=0
    _
  %s6 = ssub.s32 1, %s4
  %s7 = scalar_select 0, %s6, %s4
  %8 = sst [smem:[#allocation2]] %s0
  $region1: #{tpu_custom_call.1} parent=0
    #allocation3 [shape = 'u8[4096]{0}', space=vmem, size = 0x1000, scoped, tag = 'input window, operand 1, single buffered']
    #allocation4 [shape = 's32[1]{0}', space=sflag, size = 0x4, scoped, tag = 'scoped memory for tpu_custom_call.1']
    #allocation5 [shape = 's32[1]{0}', space=sflag, size = 0x4, scoped, tag = 'scoped memory for tpu_custom_call.1']
    #allocation6 [shape = 'u8[4096]{0}', space=vmem, size = 0x1000, scoped, tag = 'input window, operand 2, single buffered']
    #allocation7 [shape = 's32[1]{0}', space=sflag, size = 0x4, scoped, tag = 'scoped memory for tpu_custom_call.1']
    #allocation8 [shape = 'u8[4096]{0}', space=vmem, size = 0x1000, scoped, tag = 'output window, operand 0, single buffered']
    %9 = vsyncpa [#allocation4], 0
    %10 = vsyncpa [#allocation7], 0
    %11 = vsyncpa [#allocation5], 0
    // Predicated region
    $region2: #{tpu_custom_call.1} parent=1 // pred_check
      _
    $region3: #{tpu_custom_call.1} parent=1 // pred_check_branch
      %13 = sbr.rel (0) target = $region5
    $region4: #{tpu_custom_call.1} parent=1 // pred_region
      _
    $region5: #{tpu_custom_call.1} parent=1 // pred_fallthru
      _
    // Predicated region
    $region6: #{tpu_custom_call.1} parent=1 // pred_check
      _
    $region7: #{tpu_custom_call.1} parent=1 // pred_check_branch
      %15 = sbr.rel (0) target = $region9
    $region8: #{tpu_custom_call.1} parent=1 // pred_region
      %s17 = ssub.s32 128, 128
      %18 = vsyncadd [#allocation4], %s17
      %s20 = sshll.u32 [#allocation3], 4
      %s21 = int_to_ptr.vmem [resolvable:$true] %s20
      %23 = dma.hbm_to_vmem [thread:$0]  %s1, 128, %s21, [#allocation4]
    $region9: #{tpu_custom_call.1} parent=1 // pred_fallthru
      _
    // Predicated region
    $region10: #{tpu_custom_call.1} parent=1 // pred_check
      _
    $region11: #{tpu_custom_call.1} parent=1 // pred_check_branch
      %25 = sbr.rel (0) target = $region13
    $region12: #{tpu_custom_call.1} parent=1 // pred_region
      %s27 = ssub.s32 128, 128
      %28 = vsyncadd [#allocation7], %s27
      %s30 = sshll.u32 [#allocation6], 4
      %s31 = int_to_ptr.vmem [resolvable:$true] %s30
      %33 = dma.hbm_to_vmem [thread:$0]  %s2, 128, %s31, [#allocation7]
    $region13: #{tpu_custom_call.1} parent=1 // pred_fallthru
      _
    // Predicated region
    $region14: #{tpu_custom_call.1} parent=1 // pred_check
      _
    $region15: #{tpu_custom_call.1} parent=1 // pred_check_branch
      %35 = sbr.rel (0) target = $region17
    $region16: #{tpu_custom_call.1} parent=1 // pred_region
      %36 = dma.done [#allocation4], 128
    $region17: #{tpu_custom_call.1} parent=1 // pred_fallthru
      _
    // Predicated region
    $region18: #{tpu_custom_call.1} parent=1 // pred_check
      _
    $region19: #{tpu_custom_call.1} parent=1 // pred_check_branch
      %38 = sbr.rel (0) target = $region21
    $region20: #{tpu_custom_call.1} parent=1 // pred_region
      %39 = dma.done [#allocation7], 128
    $region21: #{tpu_custom_call.1} parent=1 // pred_fallthru
      _
    %v40 = vld [vmem:[#allocation3] sm:$0xff]
    %v41 = vld [vmem:[#allocation6] sm:$0xff]
    %v42 = vadd.f32 %v40, %v41
    %vm43 = vcmask 523264
    %44 = vst.msk [vmem:[#allocation8] sm:$0xff] %vm43, %v42
    // Predicated region
    $region22: #{tpu_custom_call.1} parent=1 // pred_check
      _
    $region23: #{tpu_custom_call.1} parent=1 // pred_check_branch
      %46 = sbr.rel (0) target = $region25
    $region24: #{tpu_custom_call.1} parent=1 // pred_region
      %s48 = ssub.s32 128, 128
      %49 = vsyncadd [#allocation5], %s48
      %s51 = sshll.u32 [#allocation8], 4
      %s52 = int_to_ptr.vmem [resolvable:$true] %s51
      %54 = dma.vmem_to_hbm [thread:$0]  %s52, 128, %s3, [#allocation5]
    $region25: #{tpu_custom_call.1} parent=1 // pred_fallthru
      _
    // Predicated region
    $region26: #{tpu_custom_call.1} parent=1 // pred_check
      _
    $region27: #{tpu_custom_call.1} parent=1 // pred_check_branch
      %56 = sbr.rel (0) target = $region29
    $region28: #{tpu_custom_call.1} parent=1 // pred_region
      %57 = dma.done [#allocation5], 128
    $region29: #{tpu_custom_call.1} parent=1 // pred_fallthru
      _
    %58 = vsyncpa [#allocation4], 1
    %59 = vsyncpa [#allocation7], 1
    %60 = vsyncpa [#allocation5], 1

</llo_original>
